<compile_context>
chip_gen: v6e
topology: v6e:2x2x1
jax: 0.10.0
libtpu: 0.0.40
codegen_flags: <defaults>
</compile_context>

<pallas_src>
import jax
import jax.numpy as jnp
from jax.experimental import pallas as pl
from jax.experimental.pallas import tpu as pltpu


def _round_up(v, m):
    return ((v + m - 1) // m) * m


# ----------------------------- Pallas kernel --------------------------------


def make_fused_gcn_kernel(num_layers, num_rel):
    """Single-invocation kernel computing the whole R-GIN GCN forward.

    Positional refs (grid=(), everything VMEM resident):
        x_ref              (N, F0)               f32
        adj_ref            (R*N, N)              f32   stacked per-relation adjacency
        per layer li (4 refs each):
            w1_ref         ((R+1)*Fin, (R+1)*Fout) f32  block-diag [W1_0..W1_{R-1}, W_self]
            w2_ref         ((R+1)*Fout, out_w)     f32  stacked   [W2_0..W2_{R-1}; I]
            gb_ref         (2, R*Fout)             f32  rows: gamma_cat, beta_cat
            bias_ref       (1, out_w)              f32  b_self + sum_r b2_r (b1 dropped)
        o_ref              (N, 128)               f32   lane-dense padded output
        h_buf, z_buf       (N, >=128)             f32   VMEM scratch for lane packing
    """

    def kernel(x_ref, adj_ref, *args):
        param_refs = args[: 4 * num_layers]
        o_ref = args[4 * num_layers]
        h_buf = args[4 * num_layers + 1]
        z_buf = args[4 * num_layers + 2]

        n = x_ref.shape[0]
        x = x_ref[...]                                   # (N, F0) f32
        adj = adj_ref[...]                               # (R*N, N) f32

        for li in range(num_layers):                     # static unroll (2 layers)
            w1_ref, w2_ref, gb_ref, bias_ref = param_refs[4 * li: 4 * li + 4]
            fin = w1_ref.shape[0] // (num_rel + 1)
            fout = w2_ref.shape[0] // (num_rel + 1)
            rel_w = num_rel * fout
            hw = (num_rel + 1) * fin
            zw = (num_rel + 1) * fout

            # --- GIN aggregation for ALL relations: one MXU push (R*N, N) @ (N, Fin) ---
            agg = jnp.dot(adj, x, preferred_element_type=jnp.float32)     # (R*N, Fin)

            # --- lane-pack [h_0 | h_1 | h_2 | x] into scratch (h_r = x + agg_r) ---
            for r in range(num_rel):
                h_buf[:, r * fin:(r + 1) * fin] = x + agg[r * n:(r + 1) * n, :]
            h_buf[:, num_rel * fin:hw] = x

            # --- block-diagonal W1 (+ W_self block): one wide matmul ---
            z = jnp.dot(h_buf[:, :hw], w1_ref[...],
                        preferred_element_type=jnp.float32)               # (N, (R+1)Fout)
            z_buf[:, :zw] = z

            # --- BatchNorm1d (training): biased batch stats per (relation, feature)
            #     column.  The +b1 bias is dropped: it cancels exactly in the mean
            #     subtraction.  Affine folded into scale/shift; independent reductions. ---
            zrel = z_buf[:, :rel_w]
            mean = jnp.mean(zrel, axis=0, keepdims=True)
            msq = jnp.mean(zrel * zrel, axis=0, keepdims=True)
            var = jnp.maximum(msq - mean * mean, 0.0)
            scale = gb_ref[0:1, :] * jax.lax.rsqrt(var + 1e-5)
            shift = gb_ref[1:2, :] - mean * scale
            z_buf[:, :rel_w] = jnp.maximum(zrel * scale + shift, 0.0)     # BN + ReLU

            # --- stacked W2 (+ identity self block): relation sum + self add in one matmul ---
            out = jnp.dot(z_buf[:, :zw], w2_ref[...],
                          preferred_element_type=jnp.float32) + bias_ref[...]

            if li != num_layers - 1:
                out = jnp.maximum(out, 0.0)              # inter-layer ReLU; Dropout(0.0)=id
            x = out

        o_ref[...] = x                                   # lane-dense (N, 128) store

    return kernel


# ------------------------- one-time parameter packing ------------------------


def pack_gcn_params(layer_params, adj):
    """Hoisted out of the hot path: pack weights into block-diag / stacked form, once."""
    num_rel, n, _ = adj.shape
    num_layers = len(layer_params)
    adj_flat = adj.reshape(num_rel * n, n).astype(jnp.float32)

    packed = []
    for li, p in enumerate(layer_params):
        fin, fout = p["wt_self"].shape
        last = li == num_layers - 1
        out_w = _round_up(fout, 128) if last else fout   # lane-dense final output

        # block-diagonal first matmul: relation blocks first, self-loop block last
        w1_big = jnp.zeros(((num_rel + 1) * fin, (num_rel + 1) * fout), jnp.float32)
        for r in range(num_rel):
            w1_big = w1_big.at[r * fin:(r + 1) * fin, r * fout:(r + 1) * fout].set(p["w1t"][r])
        w1_big = w1_big.at[num_rel * fin:, num_rel * fout:].set(p["wt_self"])

        # stacked second matmul: [W2_0; W2_1; W2_2; I]; last layer zero-padded to 128 lanes
        w2_aug = jnp.zeros(((num_rel + 1) * fout, out_w), jnp.float32)
        for r in range(num_rel):
            w2_aug = w2_aug.at[r * fout:(r + 1) * fout, :fout].set(p["w2t"][r])
        w2_aug = w2_aug.at[num_rel * fout:, :fout].set(jnp.eye(fout, dtype=jnp.float32))

        # BN affine, relation-major (matches the lane-concat column order)
        gb = jnp.stack([p["gamma"].reshape(-1), p["beta"].reshape(-1)]).astype(jnp.float32)

        # b1 dropped (exact no-op before training-mode BN); b_self + sum_r b2_r fused
        bias = p["b_self"][0] + jnp.sum(p["b2"], axis=0)
        bias_row = jnp.zeros((1, out_w), jnp.float32).at[0, :fout].set(bias)

        packed += [w1_big, w2_aug, gb, bias_row]
    return adj_flat, tuple(packed)


# ------------------------------ JAX wrapper ----------------------------------


def build_gcn_forward(layer_params, num_rel, n, output_dim, dropout_p=0.0):
    """Whole forward pass as a single fused, jitted Pallas kernel call."""
    del dropout_p  # 0.0 -> identity; stochastic dropout is not reproduced.
    num_layers = len(layer_params)
    fins = [p["wt_self"].shape[0] for p in layer_params]
    fouts = [p["wt_self"].shape[1] for p in layer_params]
    out_width = _round_up(output_dim, 128)
    hw_max = _round_up(max((num_rel + 1) * f for f in fins), 128)
    zw_max = _round_up(max((num_rel + 1) * f for f in fouts), 128)

    kernel = make_fused_gcn_kernel(num_layers, num_rel)
    vmem = pl.BlockSpec(memory_space=pltpu.MemorySpace.VMEM)
    num_inputs = 2 + 4 * num_layers

    call = pl.pallas_call(
        kernel,
        out_shape=jax.ShapeDtypeStruct((n, out_width), jnp.float32),
        in_specs=[vmem] * num_inputs,
        out_specs=vmem,
        scratch_shapes=[pltpu.VMEM((n, hw_max), jnp.float32),
                        pltpu.VMEM((n, zw_max), jnp.float32)],
    )

    @jax.jit
    def forward(x, adj_flat, packed):
        return call(x, adj_flat, *packed)[:, :output_dim]

    return forward


# --------------------------- parameter construction -------------------------


def _torch_linear_init(key, fan_in, fan_out):
    """Deterministic stand-in for torch.nn.Linear default init: U(-1/sqrt(fan_in), ...)."""
    kw, kb = jax.random.split(key)
    bound = 1.0 / float(fan_in) ** 0.5
    w = jax.random.uniform(kw, (fan_out, fan_in), jnp.float32, -bound, bound)
    b = jax.random.uniform(kb, (fan_out,), jnp.float32, -bound, bound)
    return w, b


def make_rgin_layer_params(key, fin, fout, num_rel):
    keys = jax.random.split(key, 1 + 2 * num_rel)
    w_self, b_self = _torch_linear_init(keys[0], fin, fout)
    w1t, b1, w2t, b2 = [], [], [], []
    for r in range(num_rel):
        w1, bb1 = _torch_linear_init(keys[1 + 2 * r], fin, fout)
        w2, bb2 = _torch_linear_init(keys[2 + 2 * r], fout, fout)
        w1t.append(w1.T)
        b1.append(bb1)
        w2t.append(w2.T)
        b2.append(bb2)
    return {
        "wt_self": w_self.T,                                  # (fin, fout)
        "b_self": b_self[None, :],                            # (1, fout)
        "w1t": jnp.stack(w1t),                                # (R, fin, fout)
        "b1": jnp.stack(b1),                                  # (R, fout)  (no-op before BN)
        "gamma": jnp.ones((num_rel, fout), jnp.float32),      # BatchNorm1d weight init
        "beta": jnp.zeros((num_rel, fout), jnp.float32),      # BatchNorm1d bias init
        "w2t": jnp.stack(w2t),                                # (R, fout, fout)
        "b2": jnp.stack(b2),                                  # (R, fout)
    }


# ------------------------------ pure-JAX reference ---------------------------


def ref_forward(x, adj, layer_params):
    num_layers = len(layer_params)
    for i, p in enumerate(layer_params):
        out = x @ p["wt_self"] + p["b_self"]
        for r in range(adj.shape[0]):
            h = x + adj[r] @ x
            z = h @ p["w1t"][r] + p["b1"][r]
            mean = z.mean(0, keepdims=True)
            var = ((z - mean) ** 2).mean(0, keepdims=True)
            z = (z - mean) / jnp.sqrt(var + 1e-5) * p["gamma"][r] + p["beta"][r]
            z = jnp.maximum(z, 0.0)
            out = out + z @ p["w2t"][r] + p["b2"][r]
        if i != num_layers - 1:
            out = jnp.maximum(out, 0.0)
        x = out
    return x


# ----------------------------------- main ------------------------------------


if __name__ == "__main__":
    # args: input_dim=16, hidden_layers=[32], output_dim=8, num_relations=3,
    #       dropout=0.0, layer_type='R-GIN'
    input_dim, hidden_layers, output_dim = 16, [32], 8
    num_relations = 3
    dropout_p = 0.0
    num_nodes, num_edges = 32, 96

    key = jax.random.PRNGKey(0)
    kx, ke1, ke2, ket, kp = jax.random.split(key, 5)

    x = jax.random.normal(kx, (num_nodes, input_dim), jnp.float32)
    src = jax.random.randint(ke1, (num_edges,), 0, num_nodes)
    dst = jax.random.randint(ke2, (num_edges,), 0, num_nodes)
    edge_index = jnp.stack([src, dst])                       # (2, E), like graph.edge_index
    edge_type = jax.random.randint(ket, (num_edges,), 0, num_relations)

    # dense per-relation adjacency: A[r, dst, src] += 1  (one-time glue; data-dependent
    # scatter done in plain JAX — it has no rectangular-tile Pallas form at this size)
    adj = jnp.zeros((num_relations, num_nodes, num_nodes), jnp.float32)
    adj = adj.at[edge_type, edge_index[1], edge_index[0]].add(1.0)

    # build layer parameters: [input_dim] + hidden_layers + [output_dim]
    feats = [input_dim] + list(hidden_layers) + [output_dim]
    layer_keys = jax.random.split(kp, len(feats) - 1)
    layer_params = [
        make_rgin_layer_params(layer_keys[i], feats[i], feats[i + 1], num_relations)
        for i in range(len(feats) - 1)
    ]

    # one-time packing (hoisted out of the hot path) + jitted single-kernel forward
    adj_flat, packed = pack_gcn_params(layer_params, adj)
    forward = build_gcn_forward(layer_params, num_relations, num_nodes, output_dim, dropout_p)

    out = jax.block_until_ready(forward(x, adj_flat, packed))

    ref = ref_forward(x, adj, layer_params)
    assert out.shape == (num_nodes, output_dim)
    # f32 operands everywhere; tolerance covers MXU default-precision f32 matmuls and the
    # algebraically-equivalent BN rewrite (b1 dropped, E[z^2]-E[z]^2 variance).
    assert jnp.allclose(out, ref, atol=5e-2, rtol=5e-2), "mismatch vs pure-JAX reference"

    # TODO(synk): stochastic Dropout (p>0, training mode) has no deterministic Pallas
    # equivalent; args.dropout is fixed to 0.0 so it is the identity here.
    print("KERNEL_OK")
</pallas_src>

<mosaic_0001>
module attributes {stable_mosaic.version = 11 : i64} {
  func.func @kernel(%arg0: memref<32x16xf32, #tpu.memory_space<vmem>>, %arg1: memref<96x32xf32, #tpu.memory_space<vmem>>, %arg2: memref<64x128xf32, #tpu.memory_space<vmem>>, %arg3: memref<128x32xf32, #tpu.memory_space<vmem>>, %arg4: memref<2x96xf32, #tpu.memory_space<vmem>>, %arg5: memref<1x32xf32, #tpu.memory_space<vmem>>, %arg6: memref<128x32xf32, #tpu.memory_space<vmem>>, %arg7: memref<32x128xf32, #tpu.memory_space<vmem>>, %arg8: memref<2x24xf32, #tpu.memory_space<vmem>>, %arg9: memref<1x128xf32, #tpu.memory_space<vmem>>, %arg10: memref<32x128xf32, #tpu.memory_space<vmem>>, %arg11: memref<32x128xf32, #tpu.memory_space<vmem>>, %arg12: memref<32x128xf32, #tpu.memory_space<vmem>>) attributes {dimension_semantics = [], scalar_prefetch = 0 : i64, scratch_operands = 2 : i64, tpu.core_type = #tpu.core_type<tc>} {
    %c0 = arith.constant 0 : index
    %c0_0 = arith.constant 0 : index
    %0 = vector.load %arg0[%c0, %c0_0] : memref<32x16xf32, #tpu.memory_space<vmem>>, vector<32x16xf32>
    %c0_1 = arith.constant 0 : index
    %c0_2 = arith.constant 0 : index
    %1 = vector.load %arg1[%c0_1, %c0_2] : memref<96x32xf32, #tpu.memory_space<vmem>>, vector<96x32xf32>
    %cst = arith.constant dense<0.000000e+00> : vector<96x16xf32>
    %2 = tpu.matmul %1, %0, %cst {dimension_numbers = #tpu.dot_dimension_numbers<[1], [0], [0], [1], [0, 0, 1, 1], [], []>} : vector<96x32xf32>, vector<32x16xf32>, vector<96x16xf32> -> vector<96x16xf32>
    %3 = vector.extract_strided_slice %2 {offsets = [0, 0], sizes = [32, 16], strides = [1, 1]} : vector<96x16xf32> to vector<32x16xf32>
    %4 = arith.addf %0, %3 : vector<32x16xf32>
    %c0_3 = arith.constant 0 : index
    %c0_4 = arith.constant 0 : index
    %5 = vector.load %arg11[%c0_3, %c0_4] : memref<32x128xf32, #tpu.memory_space<vmem>>, vector<32x16xf32>
    tpu.vector_store %arg11[%c0_3, %c0_4], %4 {strides = array<i32>} : memref<32x128xf32, #tpu.memory_space<vmem>>, vector<32x16xf32>,
    %6 = vector.extract_strided_slice %2 {offsets = [32, 0], sizes = [32, 16], strides = [1, 1]} : vector<96x16xf32> to vector<32x16xf32>
    %7 = arith.addf %0, %6 : vector<32x16xf32>
    %c0_5 = arith.constant 0 : index
    %c16 = arith.constant 16 : index
    %8 = vector.load %arg11[%c0_5, %c16] : memref<32x128xf32, #tpu.memory_space<vmem>>, vector<32x16xf32>
    tpu.vector_store %arg11[%c0_5, %c16], %7 {strides = array<i32>} : memref<32x128xf32, #tpu.memory_space<vmem>>, vector<32x16xf32>,
    %9 = vector.extract_strided_slice %2 {offsets = [64, 0], sizes = [32, 16], strides = [1, 1]} : vector<96x16xf32> to vector<32x16xf32>
    %10 = arith.addf %0, %9 : vector<32x16xf32>
    %c0_6 = arith.constant 0 : index
    %c32 = arith.constant 32 : index
    %11 = vector.load %arg11[%c0_6, %c32] : memref<32x128xf32, #tpu.memory_space<vmem>>, vector<32x16xf32>
    tpu.vector_store %arg11[%c0_6, %c32], %10 {strides = array<i32>} : memref<32x128xf32, #tpu.memory_space<vmem>>, vector<32x16xf32>,
    %c0_7 = arith.constant 0 : index
    %c48 = arith.constant 48 : index
    %12 = vector.load %arg11[%c0_7, %c48] : memref<32x128xf32, #tpu.memory_space<vmem>>, vector<32x16xf32>
    tpu.vector_store %arg11[%c0_7, %c48], %0 {strides = array<i32>} : memref<32x128xf32, #tpu.memory_space<vmem>>, vector<32x16xf32>,
    %c0_8 = arith.constant 0 : index
    %c0_9 = arith.constant 0 : index
    %13 = vector.load %arg11[%c0_8, %c0_9] : memref<32x128xf32, #tpu.memory_space<vmem>>, vector<32x64xf32>
    %c0_10 = arith.constant 0 : index
    %c0_11 = arith.constant 0 : index
    %14 = vector.load %arg2[%c0_10, %c0_11] : memref<64x128xf32, #tpu.memory_space<vmem>>, vector<64x128xf32>
    %cst_12 = arith.constant dense<0.000000e+00> : vector<32x128xf32>
    %15 = tpu.matmul %13, %14, %cst_12 {dimension_numbers = #tpu.dot_dimension_numbers<[1], [0], [0], [1], [0, 0, 1, 1], [], []>} : vector<32x64xf32>, vector<64x128xf32>, vector<32x128xf32> -> vector<32x128xf32>
    %c0_13 = arith.constant 0 : index
    %c0_14 = arith.constant 0 : index
    %16 = vector.load %arg12[%c0_13, %c0_14] : memref<32x128xf32, #tpu.memory_space<vmem>>, vector<32x128xf32>
    tpu.vector_store %arg12[%c0_13, %c0_14], %15 {strides = array<i32>} : memref<32x128xf32, #tpu.memory_space<vmem>>, vector<32x128xf32>,
    %c0_15 = arith.constant 0 : index
    %c0_16 = arith.constant 0 : index
    %17 = vector.load %arg12[%c0_15, %c0_16] : memref<32x128xf32, #tpu.memory_space<vmem>>, vector<32x96xf32>
    %cst_17 = arith.constant dense<0.000000e+00> : vector<96xf32>
    %18 = vector.multi_reduction <add>, %17, %cst_17 [0] : vector<32x96xf32> to vector<96xf32>
    %19 = vector.shape_cast %18 : vector<96xf32> to vector<1x96xf32>
    %cst_18 = arith.constant 3.200000e+01 : f32
    %20 = vector.broadcast %cst_18 : f32 to vector<1x96xf32>
    %21 = arith.divf %19, %20 : vector<1x96xf32>
    %22 = arith.mulf %17, %17 : vector<32x96xf32>
    %cst_19 = arith.constant dense<0.000000e+00> : vector<96xf32>
    %23 = vector.multi_reduction <add>, %22, %cst_19 [0] : vector<32x96xf32> to vector<96xf32>
    %24 = vector.shape_cast %23 : vector<96xf32> to vector<1x96xf32>
    %cst_20 = arith.constant 3.200000e+01 : f32
    %25 = vector.broadcast %cst_20 : f32 to vector<1x96xf32>
    %26 = arith.divf %24, %25 : vector<1x96xf32>
    %27 = arith.mulf %21, %21 : vector<1x96xf32>
    %28 = arith.subf %26, %27 : vector<1x96xf32>
    %cst_21 = arith.constant 0.000000e+00 : f32
    %29 = vector.broadcast %cst_21 : f32 to vector<1x96xf32>
    %30 = arith.maximumf %28, %29 : vector<1x96xf32>
    %c0_22 = arith.constant 0 : index
    %c0_23 = arith.constant 0 : index
    %31 = vector.load %arg4[%c0_22, %c0_23] : memref<2x96xf32, #tpu.memory_space<vmem>>, vector<1x96xf32>
    %cst_24 = arith.constant 9.99999974E-6 : f32
    %32 = vector.broadcast %cst_24 : f32 to vector<1x96xf32>
    %33 = arith.addf %30, %32 : vector<1x96xf32>
    %34 = math.rsqrt %33 : vector<1x96xf32>
    %35 = arith.mulf %31, %34 : vector<1x96xf32>
    %c1 = arith.constant 1 : index
    %c0_25 = arith.constant 0 : index
    %36 = vector.load %arg4[%c1, %c0_25] : memref<2x96xf32, #tpu.memory_space<vmem>>, vector<1x96xf32>
    %37 = arith.mulf %21, %35 : vector<1x96xf32>
    %38 = arith.subf %36, %37 : vector<1x96xf32>
    %39 = vector.broadcast %35 : vector<1x96xf32> to vector<32x96xf32>
    %40 = arith.mulf %17, %39 : vector<32x96xf32>
    %41 = vector.broadcast %38 : vector<1x96xf32> to vector<32x96xf32>
    %42 = arith.addf %40, %41 : vector<32x96xf32>
    %cst_26 = arith.constant 0.000000e+00 : f32
    %43 = vector.broadcast %cst_26 : f32 to vector<32x96xf32>
    %44 = arith.maximumf %42, %43 : vector<32x96xf32>
    %c0_27 = arith.constant 0 : index
    %c0_28 = arith.constant 0 : index
    %45 = vector.load %arg12[%c0_27, %c0_28] : memref<32x128xf32, #tpu.memory_space<vmem>>, vector<32x96xf32>
    tpu.vector_store %arg12[%c0_27, %c0_28], %44 {strides = array<i32>} : memref<32x128xf32, #tpu.memory_space<vmem>>, vector<32x96xf32>,
    %c0_29 = arith.constant 0 : index
    %c0_30 = arith.constant 0 : index
    %46 = vector.load %arg12[%c0_29, %c0_30] : memref<32x128xf32, #tpu.memory_space<vmem>>, vector<32x128xf32>
    %c0_31 = arith.constant 0 : index
    %c0_32 = arith.constant 0 : index
    %47 = vector.load %arg3[%c0_31, %c0_32] : memref<128x32xf32, #tpu.memory_space<vmem>>, vector<128x32xf32>
    %cst_33 = arith.constant dense<0.000000e+00> : vector<32x32xf32>
    %48 = tpu.matmul %46, %47, %cst_33 {dimension_numbers = #tpu.dot_dimension_numbers<[1], [0], [0], [1], [0, 0, 1, 1], [], []>} : vector<32x128xf32>, vector<128x32xf32>, vector<32x32xf32> -> vector<32x32xf32>
    %c0_34 = arith.constant 0 : index
    %c0_35 = arith.constant 0 : index
    %49 = vector.load %arg5[%c0_34, %c0_35] : memref<1x32xf32, #tpu.memory_space<vmem>>, vector<1x32xf32>
    %50 = vector.broadcast %49 : vector<1x32xf32> to vector<32x32xf32>
    %51 = arith.addf %48, %50 : vector<32x32xf32>
    %cst_36 = arith.constant 0.000000e+00 : f32
    %52 = vector.broadcast %cst_36 : f32 to vector<32x32xf32>
    %53 = arith.maximumf %51, %52 : vector<32x32xf32>
    %cst_37 = arith.constant dense<0.000000e+00> : vector<96x32xf32>
    %54 = tpu.matmul %1, %53, %cst_37 {dimension_numbers = #tpu.dot_dimension_numbers<[1], [0], [0], [1], [0, 0, 1, 1], [], []>} : vector<96x32xf32>, vector<32x32xf32>, vector<96x32xf32> -> vector<96x32xf32>
    %55 = vector.extract_strided_slice %54 {offsets = [0, 0], sizes = [32, 32], strides = [1, 1]} : vector<96x32xf32> to vector<32x32xf32>
    %56 = arith.addf %53, %55 : vector<32x32xf32>
    %c0_38 = arith.constant 0 : index
    %c0_39 = arith.constant 0 : index
    %57 = vector.load %arg11[%c0_38, %c0_39] : memref<32x128xf32, #tpu.memory_space<vmem>>, vector<32x32xf32>
    tpu.vector_store %arg11[%c0_38, %c0_39], %56 {strides = array<i32>} : memref<32x128xf32, #tpu.memory_space<vmem>>, vector<32x32xf32>,
    %58 = vector.extract_strided_slice %54 {offsets = [32, 0], sizes = [32, 32], strides = [1, 1]} : vector<96x32xf32> to vector<32x32xf32>
    %59 = arith.addf %53, %58 : vector<32x32xf32>
    %c0_40 = arith.constant 0 : index
    %c32_41 = arith.constant 32 : index
    %60 = vector.load %arg11[%c0_40, %c32_41] : memref<32x128xf32, #tpu.memory_space<vmem>>, vector<32x32xf32>
    tpu.vector_store %arg11[%c0_40, %c32_41], %59 {strides = array<i32>} : memref<32x128xf32, #tpu.memory_space<vmem>>, vector<32x32xf32>,
    %61 = vector.extract_strided_slice %54 {offsets = [64, 0], sizes = [32, 32], strides = [1, 1]} : vector<96x32xf32> to vector<32x32xf32>
    %62 = arith.addf %53, %61 : vector<32x32xf32>
    %c0_42 = arith.constant 0 : index
    %c64 = arith.constant 64 : index
    %63 = vector.load %arg11[%c0_42, %c64] : memref<32x128xf32, #tpu.memory_space<vmem>>, vector<32x32xf32>
    tpu.vector_store %arg11[%c0_42, %c64], %62 {strides = array<i32>} : memref<32x128xf32, #tpu.memory_space<vmem>>, vector<32x32xf32>,
    %c0_43 = arith.constant 0 : index
    %c96 = arith.constant 96 : index
    %64 = vector.load %arg11[%c0_43, %c96] : memref<32x128xf32, #tpu.memory_space<vmem>>, vector<32x32xf32>
    tpu.vector_store %arg11[%c0_43, %c96], %53 {strides = array<i32>} : memref<32x128xf32, #tpu.memory_space<vmem>>, vector<32x32xf32>,
    %c0_44 = arith.constant 0 : index
    %c0_45 = arith.constant 0 : index
    %65 = vector.load %arg11[%c0_44, %c0_45] : memref<32x128xf32, #tpu.memory_space<vmem>>, vector<32x128xf32>
    %c0_46 = arith.constant 0 : index
    %c0_47 = arith.constant 0 : index
    %66 = vector.load %arg6[%c0_46, %c0_47] : memref<128x32xf32, #tpu.memory_space<vmem>>, vector<128x32xf32>
    %cst_48 = arith.constant dense<0.000000e+00> : vector<32x32xf32>
    %67 = tpu.matmul %65, %66, %cst_48 {dimension_numbers = #tpu.dot_dimension_numbers<[1], [0], [0], [1], [0, 0, 1, 1], [], []>} : vector<32x128xf32>, vector<128x32xf32>, vector<32x32xf32> -> vector<32x32xf32>
    %c0_49 = arith.constant 0 : index
    %c0_50 = arith.constant 0 : index
    %68 = vector.load %arg12[%c0_49, %c0_50] : memref<32x128xf32, #tpu.memory_space<vmem>>, vector<32x32xf32>
    tpu.vector_store %arg12[%c0_49, %c0_50], %67 {strides = array<i32>} : memref<32x128xf32, #tpu.memory_space<vmem>>, vector<32x32xf32>,
    %c0_51 = arith.constant 0 : index
    %c0_52 = arith.constant 0 : index
    %69 = vector.load %arg12[%c0_51, %c0_52] : memref<32x128xf32, #tpu.memory_space<vmem>>, vector<32x24xf32>
    %cst_53 = arith.constant dense<0.000000e+00> : vector<24xf32>
    %70 = vector.multi_reduction <add>, %69, %cst_53 [0] : vector<32x24xf32> to vector<24xf32>
    %71 = vector.shape_cast %70 : vector<24xf32> to vector<1x24xf32>
    %cst_54 = arith.constant 3.200000e+01 : f32
    %72 = vector.broadcast %cst_54 : f32 to vector<1x24xf32>
    %73 = arith.divf %71, %72 : vector<1x24xf32>
    %74 = arith.mulf %69, %69 : vector<32x24xf32>
    %cst_55 = arith.constant dense<0.000000e+00> : vector<24xf32>
    %75 = vector.multi_reduction <add>, %74, %cst_55 [0] : vector<32x24xf32> to vector<24xf32>
    %76 = vector.shape_cast %75 : vector<24xf32> to vector<1x24xf32>
    %cst_56 = arith.constant 3.200000e+01 : f32
    %77 = vector.broadcast %cst_56 : f32 to vector<1x24xf32>
    %78 = arith.divf %76, %77 : vector<1x24xf32>
    %79 = arith.mulf %73, %73 : vector<1x24xf32>
    %80 = arith.subf %78, %79 : vector<1x24xf32>
    %cst_57 = arith.constant 0.000000e+00 : f32
    %81 = vector.broadcast %cst_57 : f32 to vector<1x24xf32>
    %82 = arith.maximumf %80, %81 : vector<1x24xf32>
    %c0_58 = arith.constant 0 : index
    %c0_59 = arith.constant 0 : index
    %83 = vector.load %arg8[%c0_58, %c0_59] : memref<2x24xf32, #tpu.memory_space<vmem>>, vector<1x24xf32>
    %cst_60 = arith.constant 9.99999974E-6 : f32
    %84 = vector.broadcast %cst_60 : f32 to vector<1x24xf32>
    %85 = arith.addf %82, %84 : vector<1x24xf32>
    %86 = math.rsqrt %85 : vector<1x24xf32>
    %87 = arith.mulf %83, %86 : vector<1x24xf32>
    %c1_61 = arith.constant 1 : index
    %c0_62 = arith.constant 0 : index
    %88 = vector.load %arg8[%c1_61, %c0_62] : memref<2x24xf32, #tpu.memory_space<vmem>>, vector<1x24xf32>
    %89 = arith.mulf %73, %87 : vector<1x24xf32>
    %90 = arith.subf %88, %89 : vector<1x24xf32>
    %91 = vector.broadcast %87 : vector<1x24xf32> to vector<32x24xf32>
    %92 = arith.mulf %69, %91 : vector<32x24xf32>
    %93 = vector.broadcast %90 : vector<1x24xf32> to vector<32x24xf32>
    %94 = arith.addf %92, %93 : vector<32x24xf32>
    %cst_63 = arith.constant 0.000000e+00 : f32
    %95 = vector.broadcast %cst_63 : f32 to vector<32x24xf32>
    %96 = arith.maximumf %94, %95 : vector<32x24xf32>
    %c0_64 = arith.constant 0 : index
    %c0_65 = arith.constant 0 : index
    %97 = vector.load %arg12[%c0_64, %c0_65] : memref<32x128xf32, #tpu.memory_space<vmem>>, vector<32x24xf32>
    tpu.vector_store %arg12[%c0_64, %c0_65], %96 {strides = array<i32>} : memref<32x128xf32, #tpu.memory_space<vmem>>, vector<32x24xf32>,
    %c0_66 = arith.constant 0 : index
    %c0_67 = arith.constant 0 : index
    %98 = vector.load %arg12[%c0_66, %c0_67] : memref<32x128xf32, #tpu.memory_space<vmem>>, vector<32x32xf32>
    %c0_68 = arith.constant 0 : index
    %c0_69 = arith.constant 0 : index
    %99 = vector.load %arg7[%c0_68, %c0_69] : memref<32x128xf32, #tpu.memory_space<vmem>>, vector<32x128xf32>
    %cst_70 = arith.constant dense<0.000000e+00> : vector<32x128xf32>
    %100 = tpu.matmul %98, %99, %cst_70 {dimension_numbers = #tpu.dot_dimension_numbers<[1], [0], [0], [1], [0, 0, 1, 1], [], []>} : vector<32x32xf32>, vector<32x128xf32>, vector<32x128xf32> -> vector<32x128xf32>
    %c0_71 = arith.constant 0 : index
    %c0_72 = arith.constant 0 : index
    %101 = vector.load %arg9[%c0_71, %c0_72] : memref<1x128xf32, #tpu.memory_space<vmem>>, vector<1x128xf32>
    %102 = vector.broadcast %101 : vector<1x128xf32> to vector<32x128xf32>
    %103 = arith.addf %100, %102 : vector<32x128xf32>
    %c0_73 = arith.constant 0 : index
    %c0_74 = arith.constant 0 : index
    %104 = vector.load %arg10[%c0_73, %c0_74] : memref<32x128xf32, #tpu.memory_space<vmem>>, vector<32x128xf32>
    tpu.vector_store %arg10[%c0_73, %c0_74], %103 {strides = array<i32>} : memref<32x128xf32, #tpu.memory_space<vmem>>, vector<32x128xf32>,
    return
  }
}

</mosaic_0001>

<llo_original>
// kernel: forward.1
$region0: #{forward.1}
  #allocation0 [shape = 'u32[]', space=smem, size = 0x4, offset = 0x4, fixed_abs, tag = 'smem constant byte address 0x4 - core index']
  #allocation1 [shape = 'u32[144,128]{1,0:T(1,128)}', space=vmem, size = 0x12000, scoped, tag = 'internal scratch']
  #allocation2 [shape = 'f32[32,128]{1,0:T(8,128)}', space=vmem, size = 0x4000, scoped, tag = 'scratch operand']
  #allocation3 [shape = 'f32[32,128]{1,0:T(8,128)}', space=vmem, size = 0x4000, scoped, tag = 'scratch operand']
  %s0 = inlined_call_operand.vmem [shape: f32[32,16], index: 0, kind: input, shape index: {}]
  %s1 = inlined_call_operand.vmem [shape: f32[96,32], index: 1, kind: input, shape index: {}]
  %s2 = inlined_call_operand.vmem [shape: f32[64,128], index: 2, kind: input, shape index: {}]
  %s3 = inlined_call_operand.vmem [shape: f32[128,32], index: 3, kind: input, shape index: {}]
  %s4 = inlined_call_operand.vmem [shape: f32[2,96], index: 4, kind: input, shape index: {}]
  %s5 = inlined_call_operand.vmem [shape: f32[1,32], index: 5, kind: input, shape index: {}]
  %s6 = inlined_call_operand.vmem [shape: f32[128,32], index: 6, kind: input, shape index: {}]
  %s7 = inlined_call_operand.vmem [shape: f32[32,128], index: 7, kind: input, shape index: {}]
  %s8 = inlined_call_operand.vmem [shape: f32[2,24], index: 8, kind: input, shape index: {}]
  %s9 = inlined_call_operand.vmem [shape: f32[1,128], index: 9, kind: input, shape index: {}]
  %s10 = inlined_call_operand.vmem [shape: f32[32,128], index: 10, kind: output, shape index: {}]
  %s11 = sld [smem:[#allocation0]]
  $region50: #{forward.1} parent=0
    _
  %s13 = ssub.s32 1, %s11
  %s14 = scalar_select 0, %s13, %s11
  // Predicated region
  $region2: #{forward.1} parent=0 // pred_check
    _
  $region3: #{forward.1} parent=0 // pred_check_branch
    %16 = sbr.rel (0) target = $region5
  $region4: #{forward.1} parent=0 // pred_region
    _
  $region5: #{forward.1} parent=0 // pred_fallthru
    _
  // Predicated region
  $region6: #{forward.1} parent=0 // pred_check
    _
  $region7: #{forward.1} parent=0 // pred_check_branch
    %18 = sbr.rel (0) target = $region9
  $region8: #{forward.1} parent=0 // pred_region
    _
  $region9: #{forward.1} parent=0 // pred_fallthru
    _
  // Predicated region
  $region10: #{forward.1} parent=0 // pred_check
    _
  $region11: #{forward.1} parent=0 // pred_check_branch
    %20 = sbr.rel (0) target = $region13
  $region12: #{forward.1} parent=0 // pred_region
    _
  $region13: #{forward.1} parent=0 // pred_fallthru
    _
  // Predicated region
  $region14: #{forward.1} parent=0 // pred_check
    _
  $region15: #{forward.1} parent=0 // pred_check_branch
    %22 = sbr.rel (0) target = $region17
  $region16: #{forward.1} parent=0 // pred_region
    _
  $region17: #{forward.1} parent=0 // pred_fallthru
    _
  // Predicated region
  $region18: #{forward.1} parent=0 // pred_check
    _
  $region19: #{forward.1} parent=0 // pred_check_branch
    %24 = sbr.rel (0) target = $region21
  $region20: #{forward.1} parent=0 // pred_region
    _
  $region21: #{forward.1} parent=0 // pred_fallthru
    _
  // Predicated region
  $region22: #{forward.1} parent=0 // pred_check
    _
  $region23: #{forward.1} parent=0 // pred_check_branch
    %26 = sbr.rel (0) target = $region25
  $region24: #{forward.1} parent=0 // pred_region
    _
  $region25: #{forward.1} parent=0 // pred_fallthru
    _
  // Predicated region
  $region26: #{forward.1} parent=0 // pred_check
    _
  $region27: #{forward.1} parent=0 // pred_check_branch
    %28 = sbr.rel (0) target = $region29
  $region28: #{forward.1} parent=0 // pred_region
    _
  $region29: #{forward.1} parent=0 // pred_fallthru
    _
  // Predicated region
  $region30: #{forward.1} parent=0 // pred_check
    _
  $region31: #{forward.1} parent=0 // pred_check_branch
    %30 = sbr.rel (0) target = $region33
  $region32: #{forward.1} parent=0 // pred_region
    _
  $region33: #{forward.1} parent=0 // pred_fallthru
    _
  // Predicated region
  $region34: #{forward.1} parent=0 // pred_check
    _
  $region35: #{forward.1} parent=0 // pred_check_branch
    %32 = sbr.rel (0) target = $region37
  $region36: #{forward.1} parent=0 // pred_region
    _
  $region37: #{forward.1} parent=0 // pred_fallthru
    _
  // Predicated region
  $region38: #{forward.1} parent=0 // pred_check
    _
  $region39: #{forward.1} parent=0 // pred_check_branch
    %34 = sbr.rel (0) target = $region41
  $region40: #{forward.1} parent=0 // pred_region
    _
  $region41: #{forward.1} parent=0 // pred_fallthru
    _
  %v35 = vld [vmem:[%s0] sm:$0xff]
  %v36 = vld [vmem:[%s0 + $0x8] sm:$0xff]
  %v37 = vld [vmem:[%s0 + $0x10] sm:$0xff]
  %v38 = vld [vmem:[%s0 + $0x18] sm:$0xff]
  %v39 = vld [vmem:[%s1] sm:$0xff]
  %v40 = vld [vmem:[%s1 + $0x8] sm:$0xff]
  %v41 = vld [vmem:[%s1 + $0x10] sm:$0xff]
  %v42 = vld [vmem:[%s1 + $0x18] sm:$0xff]
  %v43 = vld [vmem:[%s1 + $0x20] sm:$0xff]
  %v44 = vld [vmem:[%s1 + $0x28] sm:$0xff]
  %v45 = vld [vmem:[%s1 + $0x30] sm:$0xff]
  %v46 = vld [vmem:[%s1 + $0x38] sm:$0xff]
  %v47 = vld [vmem:[%s1 + $0x40] sm:$0xff]
  %v48 = vld [vmem:[%s1 + $0x48] sm:$0xff]
  %v49 = vld [vmem:[%s1 + $0x50] sm:$0xff]
  %v50 = vld [vmem:[%s1 + $0x58] sm:$0xff]
  %vm51 = vcmask 261120
  %v53 = vsel %vm51, %v39, 0
  %v56 = vsel %vm51, %v40, 0
  %v59 = vsel %vm51, %v41, 0
  %v62 = vsel %vm51, %v42, 0
  %v65 = vsel %vm51, %v43, 0
  %v68 = vsel %vm51, %v44, 0
  %v71 = vsel %vm51, %v45, 0
  %v74 = vsel %vm51, %v46, 0
  %v77 = vsel %vm51, %v47, 0
  %v80 = vsel %vm51, %v48, 0
  %v83 = vsel %vm51, %v49, 0
  %v86 = vsel %vm51, %v50, 0
  %88 = vmatprep.subr.mxu0 0.0
  %89 = vmatpush1.msra.mxu0 0.0
  %90 = vmatprep.subr.mxu0 0.0
  %91 = vmatpush1.msra.mxu0 0.0
  %92 = vmatprep.subr.mxu0 0.0
  %93 = vmatpush1.msra.mxu0 0.0
  %94 = vmatprep.subr.mxu0 0.0
  %95 = vmatpush1.msra.mxu0 0.0
  %96 = vmatprep.subr.mxu0 0.0
  %97 = vmatpush1.msra.mxu0 0.0
  %98 = vmatprep.subr.mxu0 0.0
  %99 = vmatpush1.msra.mxu0 0.0
  %100 = vmatprep.subr.mxu0 0.0
  %101 = vmatpush1.msra.mxu0 0.0
  %102 = vmatprep.subr.mxu0 0.0
  %103 = vmatpush1.msra.mxu0 0.0
  %104 = vmatprep.subr.mxu0 0.0
  %105 = vmatpush1.msra.mxu0 0.0
  %106 = vmatprep.subr.mxu0 0.0
  %107 = vmatpush1.msra.mxu0 0.0
  %108 = vmatprep.subr.mxu0 0.0
  %109 = vmatpush1.msra.mxu0 0.0
  %110 = vmatprep.subr.mxu0 0.0
  %111 = vmatpush1.msra.mxu0 0.0
  %112 = vmatprep.subr.mxu0 0.0
  %113 = vmatpush1.msra.mxu0 %v38
  %114 = vmatprep.subr.mxu0 0.0
  %115 = vmatpush1.msra.mxu0 %v37
  %116 = vmatprep.subr.mxu0 0.0
  %117 = vmatpush1.msra.mxu0 %v36
  %118 = vmatprep.subr.mxu0 0.0
  %119 = vmatpush1.msra.mxu0 %v35
  %120 = vmatprep.subr.mxu0 0.0
  %121 = vmatpush2.msra.mxu0 0.0
  %122 = vmatprep.subr.mxu0 0.0
  %123 = vmatpush2.msra.mxu0 0.0
  %124 = vmatprep.subr.mxu0 0.0
  %125 = vmatpush2.msra.mxu0 0.0
  %126 = vmatprep.subr.mxu0 0.0
  %127 = vmatpush2.msra.mxu0 0.0
  %128 = vmatprep.subr.mxu0 0.0
  %129 = vmatpush2.msra.mxu0 0.0
  %130 = vmatprep.subr.mxu0 0.0
  %131 = vmatpush2.msra.mxu0 0.0
  %132 = vmatprep.subr.mxu0 0.0
  %133 = vmatpush2.msra.mxu0 0.0
  %134 = vmatprep.subr.mxu0 0.0
  %135 = vmatpush2.msra.mxu0 0.0
  %136 = vmatprep.subr.mxu0 0.0
  %137 = vmatpush2.msra.mxu0 0.0
  %138 = vmatprep.subr.mxu0 0.0
  %139 = vmatpush2.msra.mxu0 0.0
  %140 = vmatprep.subr.mxu0 0.0
  %141 = vmatpush2.msra.mxu0 0.0
  %142 = vmatprep.subr.mxu0 0.0
  %143 = vmatpush2.msra.mxu0 0.0
  %144 = vmatprep.subr.mxu0 0.0
  %145 = vmatpush2.msra.mxu0 0.0
  %146 = vmatprep.subr.mxu0 0.0
  %147 = vmatpush2.msra.mxu0 0.0
  %148 = vmatprep.subr.mxu0 0.0
  %149 = vmatpush2.msra.mxu0 0.0
  %150 = vmatprep.subr.mxu0 0.0
  %151 = vmatpush2.msra.mxu0 0.0
  %152 = vmatprep.mubr.f32.mxu0 0.0
  %153 = vmatmul.mubr.f32.gmra.mxu0 %v53
  %v154 = vpop.f32.mrf.mxu0
  %v155 = vadd.f32 0.0, %v154
  %v156 = vpop.f32.mrf.mxu0
  %157 = vmatprep.mubr.f32.mxu0 0.0
  %158 = vmatmul.mubr.f32.gmra.mxu0 %v56
  %v159 = vpop.f32.mrf.mxu0
  %v160 = vadd.f32 0.0, %v159
  %v161 = vpop.f32.mrf.mxu0
  %162 = vmatprep.mubr.f32.mxu0 0.0
  %163 = vmatmul.mubr.f32.gmra.mxu0 %v59
  %v164 = vpop.f32.mrf.mxu0
  %v165 = vadd.f32 0.0, %v164
  %v166 = vpop.f32.mrf.mxu0
  %167 = vmatprep.mubr.f32.mxu0 0.0
  %168 = vmatmul.mubr.f32.gmra.mxu0 %v62
  %v169 = vpop.f32.mrf.mxu0
  %v170 = vadd.f32 0.0, %v169
  %v171 = vpop.f32.mrf.mxu0
  %172 = vmatprep.mubr.f32.mxu0 0.0
  %173 = vmatmul.mubr.f32.gmra.mxu0 %v65
  %v174 = vpop.f32.mrf.mxu0
  %v175 = vadd.f32 0.0, %v174
  %v176 = vpop.f32.mrf.mxu0
  %177 = vmatprep.mubr.f32.mxu0 0.0
  %178 = vmatmul.mubr.f32.gmra.mxu0 %v68
  %v179 = vpop.f32.mrf.mxu0
  %v180 = vadd.f32 0.0, %v179
  %v181 = vpop.f32.mrf.mxu0
  %182 = vmatprep.mubr.f32.mxu0 0.0
  %183 = vmatmul.mubr.f32.gmra.mxu0 %v71
  %v184 = vpop.f32.mrf.mxu0
  %v185 = vadd.f32 0.0, %v184
  %v186 = vpop.f32.mrf.mxu0
  %187 = vmatprep.mubr.f32.mxu0 0.0
  %188 = vmatmul.mubr.f32.gmra.mxu0 %v74
  %v189 = vpop.f32.mrf.mxu0
  %v190 = vadd.f32 0.0, %v189
  %v191 = vpop.f32.mrf.mxu0
  %192 = vmatprep.mubr.f32.mxu0 0.0
  %193 = vmatmul.mubr.f32.gmra.mxu0 %v77
  %v194 = vpop.f32.mrf.mxu0
  %v195 = vadd.f32 0.0, %v194
  %v196 = vpop.f32.mrf.mxu0
  %197 = vmatprep.mubr.f32.mxu0 0.0
  %198 = vmatmul.mubr.f32.gmra.mxu0 %v80
  %v199 = vpop.f32.mrf.mxu0
  %v200 = vadd.f32 0.0, %v199
  %v201 = vpop.f32.mrf.mxu0
  %202 = vmatprep.mubr.f32.mxu0 0.0
  %203 = vmatmul.mubr.f32.gmra.mxu0 %v83
  %v204 = vpop.f32.mrf.mxu0
  %v205 = vadd.f32 0.0, %v204
  %v206 = vpop.f32.mrf.mxu0
  %207 = vmatprep.mubr.f32.mxu0 0.0
  %208 = vmatmul.mubr.f32.gmra.mxu0 %v86
  %v209 = vpop.f32.mrf.mxu0
  %v210 = vadd.f32 0.0, %v209
  %v211 = vpop.f32.mrf.mxu0
  %212 = vdwg.mxu0
  %v213 = vadd.f32 %v35, %v155
  %v214 = vadd.f32 %v36, %v160
  %v215 = vadd.f32 %v37, %v165
  %v216 = vadd.f32 %v38, %v170
  %vm217 = vcmask 130048
  %218 = vst.msk [vmem:[#allocation2] sm:$0xff] %vm217, %v213
  %219 = vst.msk [vmem:[#allocation2 + $0x8] sm:$0xff] %vm217, %v214
  %220 = vst.msk [vmem:[#allocation2 + $0x10] sm:$0xff] %vm217, %v215
  %221 = vst.msk [vmem:[#allocation2 + $0x18] sm:$0xff] %vm217, %v216
  %v222 = vadd.f32 %v35, %v175
  %v223 = vadd.f32 %v36, %v180
  %v224 = vadd.f32 %v37, %v185
  %v225 = vadd.f32 %v38, %v190
  %230 = vrot.lane.b32.xlu0 %v222, 16
  %v231 = vpop.permute.xlu0 %230
  %232 = vrot.lane.b32.xlu0 %v223, 16
  %v233 = vpop.permute.xlu0 %232
  %234 = vrot.lane.b32.xlu0 %v224, 16
  %v235 = vpop.permute.xlu0 %234
  %236 = vrot.lane.b32.xlu0 %v225, 16
  %v237 = vpop.permute.xlu0 %236
  %vm242 = vcmask 261248
  %243 = vst.msk [vmem:[#allocation2] sm:$0xff] %vm242, %v231
  %244 = vst.msk [vmem:[#allocation2 + $0x8] sm:$0xff] %vm242, %v233
  %245 = vst.msk [vmem:[#allocation2 + $0x10] sm:$0xff] %vm242, %v235
  %246 = vst.msk [vmem:[#allocation2 + $0x18] sm:$0xff] %vm242, %v237
  %v247 = vadd.f32 %v35, %v195
  %v248 = vadd.f32 %v36, %v200
  %v249 = vadd.f32 %v37, %v205
  %v250 = vadd.f32 %v38, %v210
  %255 = vrot.lane.b32.xlu0 %v247, 32
  %v256 = vpop.permute.xlu0 %255
  %257 = vrot.lane.b32.xlu0 %v248, 32
  %v258 = vpop.permute.xlu0 %257
  %259 = vrot.lane.b32.xlu0 %v249, 32
  %v260 = vpop.permute.xlu0 %259
  %261 = vrot.lane.b32.xlu0 %v250, 32
  %v262 = vpop.permute.xlu0 %261
  %vm267 = vcmask 392448
  %268 = vst.msk [vmem:[#allocation2] sm:$0xff] %vm267, %v256
  %269 = vst.msk [vmem:[#allocation2 + $0x8] sm:$0xff] %vm267, %v258
  %270 = vst.msk [vmem:[#allocation2 + $0x10] sm:$0xff] %vm267, %v260
  %271 = vst.msk [vmem:[#allocation2 + $0x18] sm:$0xff] %vm267, %v262
  %276 = vrot.lane.b32.xlu0 %v35, 48
  %v277 = vpop.permute.xlu0 %276
  %278 = vrot.lane.b32.xlu0 %v36, 48
  %v279 = vpop.permute.xlu0 %278
  %280 = vrot.lane.b32.xlu0 %v37, 48
  %v281 = vpop.permute.xlu0 %280
  %282 = vrot.lane.b32.xlu0 %v38, 48
  %v283 = vpop.permute.xlu0 %282
  %vm288 = vcmask 523648
  %289 = vst.msk [vmem:[#allocation2] sm:$0xff] %vm288, %v277
  %290 = vst.msk [vmem:[#allocation2 + $0x8] sm:$0xff] %vm288, %v279
  %291 = vst.msk [vmem:[#allocation2 + $0x10] sm:$0xff] %vm288, %v281
  %292 = vst.msk [vmem:[#allocation2 + $0x18] sm:$0xff] %vm288, %v283
  %v293 = vld [vmem:[#allocation2] sm:$0xff]
  %v294 = vld [vmem:[#allocation2 + $0x8] sm:$0xff]
  %v295 = vld [vmem:[#allocation2 + $0x10] sm:$0xff]
  %v296 = vld [vmem:[#allocation2 + $0x18] sm:$0xff]
  %v297 = vld [vmem:[%s2] sm:$0xff]
  %v298 = vld [vmem:[%s2 + $0x8] sm:$0xff]
  %v299 = vld [vmem:[%s2 + $0x10] sm:$0xff]
  %v300 = vld [vmem:[%s2 + $0x18] sm:$0xff]
  %v301 = vld [vmem:[%s2 + $0x20] sm:$0xff]
  %v302 = vld [vmem:[%s2 + $0x28] sm:$0xff]
  %v303 = vld [vmem:[%s2 + $0x30] sm:$0xff]
  %v304 = vld [vmem:[%s2 + $0x38] sm:$0xff]
  %vm305 = vcmask 523264
  %v307 = vsel %vm305, %v293, 0
  %v310 = vsel %vm305, %v294, 0
  %v313 = vsel %vm305, %v295, 0
  %v316 = vsel %vm305, %v296, 0
  %318 = vmatprep.subr.mxu0 0.0
  %319 = vmatpush1.msra.mxu0 0.0
  %320 = vmatprep.subr.mxu0 0.0
  %321 = vmatpush1.msra.mxu0 0.0
  %322 = vmatprep.subr.mxu0 0.0
  %323 = vmatpush1.msra.mxu0 0.0
  %324 = vmatprep.subr.mxu0 0.0
  %325 = vmatpush1.msra.mxu0 0.0
  %326 = vmatprep.subr.mxu0 0.0
  %327 = vmatpush1.msra.mxu0 0.0
  %328 = vmatprep.subr.mxu0 0.0
  %329 = vmatpush1.msra.mxu0 0.0
  %330 = vmatprep.subr.mxu0 0.0
  %331 = vmatpush1.msra.mxu0 0.0
  %332 = vmatprep.subr.mxu0 0.0
  %333 = vmatpush1.msra.mxu0 0.0
  %334 = vmatprep.subr.mxu0 0.0
  %335 = vmatpush1.msra.mxu0 %v304
  %336 = vmatprep.subr.mxu0 0.0
  %337 = vmatpush1.msra.mxu0 %v303
  %338 = vmatprep.subr.mxu0 0.0
  %339 = vmatpush1.msra.mxu0 %v302
  %340 = vmatprep.subr.mxu0 0.0
  %341 = vmatpush1.msra.mxu0 %v301
  %342 = vmatprep.subr.mxu0 0.0
  %343 = vmatpush1.msra.mxu0 %v300
  %344 = vmatprep.subr.mxu0 0.0
  %345 = vmatpush1.msra.mxu0 %v299
  %346 = vmatprep.subr.mxu0 0.0
  %347 = vmatpush1.msra.mxu0 %v298
  %348 = vmatprep.subr.mxu0 0.0
  %349 = vmatpush1.msra.mxu0 %v297
  %350 = vmatprep.subr.mxu0 0.0
  %351 = vmatpush2.msra.mxu0 0.0
  %352 = vmatprep.subr.mxu0 0.0
  %353 = vmatpush2.msra.mxu0 0.0
  %354 = vmatprep.subr.mxu0 0.0
  %355 = vmatpush2.msra.mxu0 0.0
  %356 = vmatprep.subr.mxu0 0.0
  %357 = vmatpush2.msra.mxu0 0.0
  %358 = vmatprep.subr.mxu0 0.0
  %359 = vmatpush2.msra.mxu0 0.0
  %360 = vmatprep.subr.mxu0 0.0
  %361 = vmatpush2.msra.mxu0 0.0
  %362 = vmatprep.subr.mxu0 0.0
  %363 = vmatpush2.msra.mxu0 0.0
  %364 = vmatprep.subr.mxu0 0.0
  %365 = vmatpush2.msra.mxu0 0.0
  %366 = vmatprep.subr.mxu0 0.0
  %367 = vmatpush2.msra.mxu0 0.0
  %368 = vmatprep.subr.mxu0 0.0
  %369 = vmatpush2.msra.mxu0 0.0
  %370 = vmatprep.subr.mxu0 0.0
  %371 = vmatpush2.msra.mxu0 0.0
  %372 = vmatprep.subr.mxu0 0.0
  %373 = vmatpush2.msra.mxu0 0.0
  %374 = vmatprep.subr.mxu0 0.0
  %375 = vmatpush2.msra.mxu0 0.0
  %376 = vmatprep.subr.mxu0 0.0
  %377 = vmatpush2.msra.mxu0 0.0
  %378 = vmatprep.subr.mxu0 0.0
  %379 = vmatpush2.msra.mxu0 0.0
  %380 = vmatprep.subr.mxu0 0.0
  %381 = vmatpush2.msra.mxu0 0.0
  %382 = vmatprep.mubr.f32.mxu0 0.0
  %383 = vmatmul.mubr.f32.gmra.mxu0 %v307
  %v384 = vpop.f32.mrf.mxu0
  %v385 = vadd.f32 0.0, %v384
  %v386 = vpop.f32.mrf.mxu0
  %387 = vmatprep.mubr.f32.mxu0 0.0
  %388 = vmatmul.mubr.f32.gmra.mxu0 %v310
  %v389 = vpop.f32.mrf.mxu0
  %v390 = vadd.f32 0.0, %v389
  %v391 = vpop.f32.mrf.mxu0
  %392 = vmatprep.mubr.f32.mxu0 0.0
  %393 = vmatmul.mubr.f32.gmra.mxu0 %v313
  %v394 = vpop.f32.mrf.mxu0
  %v395 = vadd.f32 0.0, %v394
  %v396 = vpop.f32.mrf.mxu0
  %397 = vmatprep.mubr.f32.mxu0 0.0
  %398 = vmatmul.mubr.f32.gmra.mxu0 %v316
  %v399 = vpop.f32.mrf.mxu0
  %v400 = vadd.f32 0.0, %v399
  %v401 = vpop.f32.mrf.mxu0
  %402 = vdwg.mxu0
  %403 = vst [vmem:[#allocation3] sm:$0xff] %v385
  %404 = vst [vmem:[#allocation3 + $0x8] sm:$0xff] %v390
  %405 = vst [vmem:[#allocation3 + $0x10] sm:$0xff] %v395
  %406 = vst [vmem:[#allocation3 + $0x18] sm:$0xff] %v400
  %v407 = vld [vmem:[#allocation3] sm:$0xff]
  %v408 = vld [vmem:[#allocation3 + $0x8] sm:$0xff]
  %v409 = vld [vmem:[#allocation3 + $0x10] sm:$0xff]
  %v410 = vld [vmem:[#allocation3 + $0x18] sm:$0xff]
  %vm411 = vcmask 785408
  %v412 = vsel %vm411, %v407, 0.0
  %v413 = vsel %vm411, %v408, 0.0
  %v414 = vadd.f32 %v412, %v413
  %v415 = vsel %vm411, %v409, 0.0
  %v416 = vadd.f32 %v414, %v415
  %v417 = vsel %vm411, %v410, 0.0
  %v418 = vadd.f32 %v416, %v417
  %v419 = vrot.slane %v418, 4
  %v420 = vadd.f32 %v418, %v419
  %v421 = vrot.slane %v420, 2
  %v422 = vadd.f32 %v420, %v421
  %v423 = vrot.slane %v422, 1
  %v424 = vadd.f32 %v422, %v423
  %v425 = vrcp.pop 32.0
  %v426 = vmul.f32 %v424, %v425
  %v427 = vmul.f32 %v407, %v407
  %v428 = vmul.f32 %v408, %v408
  %v429 = vmul.f32 %v409, %v409
  %v430 = vmul.f32 %v410, %v410
  %v431 = vsel %vm411, %v427, 0.0
  %v432 = vsel %vm411, %v428, 0.0
  %v433 = vadd.f32 %v431, %v432
  %v434 = vsel %vm411, %v429, 0.0
  %v435 = vadd.f32 %v433, %v434
  %v436 = vsel %vm411, %v430, 0.0
  %v437 = vadd.f32 %v435, %v436
  %v438 = vrot.slane %v437, 4
  %v439 = vadd.f32 %v437, %v438
  %v440 = vrot.slane %v439, 2
  %v441 = vadd.f32 %v439, %v440
  %v442 = vrot.slane %v441, 1
  %v443 = vadd.f32 %v441, %v442
  %v444 = vmul.f32 %v443, %v425
  %v445 = vmul.f32 %v426, %v426
  %v446 = vsub.f32 %v444, %v445
  %v447 = vmax.f32 %v446, 0.0
  %v448 = vld [vmem:[%s4] sm:$0x1]
  %v449 = vadd.f32 %v447, 1e-05
  %v450 = vrsqrt.pop %v449
  %v451 = vmul.f32 %v448, %v450
  %v452 = vld [vmem:[%s4 + $0x1] sm:$0x1]
  %v453 = vmul.f32 %v426, %v451
  %v454 = vsub.f32 %v452, %v453
  %v455 = vlaneseq
  %v456 = vshrl.u32 %v455, 7
  %v457 = vsub.s32 0, %v456
  %v458 = vrot.slane %v451, %v457
  %v459 = vmul.f32 %v407, %v458
  %v460 = vmul.f32 %v408, %v458
  %v461 = vmul.f32 %v409, %v458
  %v462 = vmul.f32 %v410, %v458
  %v463 = vlaneseq
  %v464 = vshrl.u32 %v463, 7
  %v465 = vsub.s32 0, %v464
  %v466 = vrot.slane %v454, %v465
  %v467 = vadd.f32 %v459, %v466
  %v468 = vadd.f32 %v460, %v466
  %v469 = vadd.f32 %v461, %v466
  %v470 = vadd.f32 %v462, %v466
  %v471 = vmax.f32 %v467, 0.0
  %v472 = vmax.f32 %v468, 0.0
  %v473 = vmax.f32 %v469, 0.0
  %v474 = vmax.f32 %v470, 0.0
  %475 = vst.msk [vmem:[#allocation3] sm:$0xff] %vm411, %v471
  %476 = vst.msk [vmem:[#allocation3 + $0x8] sm:$0xff] %vm411, %v472
  %477 = vst.msk [vmem:[#allocation3 + $0x10] sm:$0xff] %vm411, %v473
  %478 = vst.msk [vmem:[#allocation3 + $0x18] sm:$0xff] %vm411, %v474
  %v479 = vld [vmem:[#allocation3] sm:$0xff]
  %v480 = vld [vmem:[#allocation3 + $0x8] sm:$0xff]
  %v481 = vld [vmem:[#allocation3 + $0x10] sm:$0xff]
  %v482 = vld [vmem:[#allocation3 + $0x18] sm:$0xff]
  %v483 = vld [vmem:[%s3] sm:$0xff]
  %v484 = vld [vmem:[%s3 + $0x8] sm:$0xff]
  %v485 = vld [vmem:[%s3 + $0x10] sm:$0xff]
  %v486 = vld [vmem:[%s3 + $0x18] sm:$0xff]
  %v487 = vld [vmem:[%s3 + $0x20] sm:$0xff]
  %v488 = vld [vmem:[%s3 + $0x28] sm:$0xff]
  %v489 = vld [vmem:[%s3 + $0x30] sm:$0xff]
  %v490 = vld [vmem:[%s3 + $0x38] sm:$0xff]
  %v491 = vld [vmem:[%s3 + $0x40] sm:$0xff]
  %v492 = vld [vmem:[%s3 + $0x48] sm:$0xff]
  %v493 = vld [vmem:[%s3 + $0x50] sm:$0xff]
  %v494 = vld [vmem:[%s3 + $0x58] sm:$0xff]
  %v495 = vld [vmem:[%s3 + $0x60] sm:$0xff]
  %v496 = vld [vmem:[%s3 + $0x68] sm:$0xff]
  %v497 = vld [vmem:[%s3 + $0x70] sm:$0xff]
  %v498 = vld [vmem:[%s3 + $0x78] sm:$0xff]
  %v499 = vld [vmem:[%s5] sm:$0x1]
  %v501 = vlaneseq
  %v502 = vshrl.u32 %v501, 7
  %v503 = vsub.s32 0, %v502
  %v504 = vrot.slane %v499, %v503
  %506 = vmatprep.subr.mxu0 0.0
  %507 = vmatpush1.msra.mxu0 %v498
  %508 = vmatprep.subr.mxu0 0.0
  %509 = vmatpush1.msra.mxu0 %v497
  %510 = vmatprep.subr.mxu0 0.0
  %511 = vmatpush1.msra.mxu0 %v496
  %512 = vmatprep.subr.mxu0 0.0
  %513 = vmatpush1.msra.mxu0 %v495
  %514 = vmatprep.subr.mxu0 0.0
  %515 = vmatpush1.msra.mxu0 %v494
  %516 = vmatprep.subr.mxu0 0.0
  %517 = vmatpush1.msra.mxu0 %v493
  %518 = vmatprep.subr.mxu0 0.0
  %519 = vmatpush1.msra.mxu0 %v492
  %520 = vmatprep.subr.mxu0 0.0
  %521 = vmatpush1.msra.mxu0 %v491
  %522 = vmatprep.subr.mxu0 0.0
  %523 = vmatpush1.msra.mxu0 %v490
  %524 = vmatprep.subr.mxu0 0.0
  %525 = vmatpush1.msra.mxu0 %v489
  %526 = vmatprep.subr.mxu0 0.0
  %527 = vmatpush1.msra.mxu0 %v488
  %528 = vmatprep.subr.mxu0 0.0
  %529 = vmatpush1.msra.mxu0 %v487
  %530 = vmatprep.subr.mxu0 0.0
  %531 = vmatpush1.msra.mxu0 %v486
  %532 = vmatprep.subr.mxu0 0.0
  %533 = vmatpush1.msra.mxu0 %v485
  %534 = vmatprep.subr.mxu0 0.0
  %535 = vmatpush1.msra.mxu0 %v484
  %536 = vmatprep.subr.mxu0 0.0
  %537 = vmatpush1.msra.mxu0 %v483
  %538 = vmatprep.subr.mxu0 0.0
  %539 = vmatpush2.msra.mxu0 0.0
  %540 = vmatprep.subr.mxu0 0.0
  %541 = vmatpush2.msra.mxu0 0.0
  %542 = vmatprep.subr.mxu0 0.0
  %543 = vmatpush2.msra.mxu0 0.0
  %544 = vmatprep.subr.mxu0 0.0
  %545 = vmatpush2.msra.mxu0 0.0
  %546 = vmatprep.subr.mxu0 0.0
  %547 = vmatpush2.msra.mxu0 0.0
  %548 = vmatprep.subr.mxu0 0.0
  %549 = vmatpush2.msra.mxu0 0.0
  %550 = vmatprep.subr.mxu0 0.0
  %551 = vmatpush2.msra.mxu0 0.0
  %552 = vmatprep.subr.mxu0 0.0
  %553 = vmatpush2.msra.mxu0 0.0
  %554 = vmatprep.subr.mxu0 0.0
  %555 = vmatpush2.msra.mxu0 0.0
  %556 = vmatprep.subr.mxu0 0.0
  %557 = vmatpush2.msra.mxu0 0.0
  %558 = vmatprep.subr.mxu0 0.0
  %559 = vmatpush2.msra.mxu0 0.0
  %560 = vmatprep.subr.mxu0 0.0
  %561 = vmatpush2.msra.mxu0 0.0
  %562 = vmatprep.subr.mxu0 0.0
  %563 = vmatpush2.msra.mxu0 0.0
  %564 = vmatprep.subr.mxu0 0.0
  %565 = vmatpush2.msra.mxu0 0.0
  %566 = vmatprep.subr.mxu0 0.0
  %567 = vmatpush2.msra.mxu0 0.0
  %568 = vmatprep.subr.mxu0 0.0
  %569 = vmatpush2.msra.mxu0 0.0
  %570 = vmatprep.mubr.f32.mxu0 0.0
  %571 = vmatmul.mubr.f32.gmra.mxu0 %v479
  %v572 = vpop.f32.mrf.mxu0
  %v573 = vadd.f32 %v504, %v572
  %v574 = vpop.f32.mrf.mxu0
  %575 = vmatprep.mubr.f32.mxu0 0.0
  %576 = vmatmul.mubr.f32.gmra.mxu0 %v480
  %v577 = vpop.f32.mrf.mxu0
  %v578 = vadd.f32 %v504, %v577
  %v579 = vpop.f32.mrf.mxu0
  %580 = vmatprep.mubr.f32.mxu0 0.0
  %581 = vmatmul.mubr.f32.gmra.mxu0 %v481
  %v582 = vpop.f32.mrf.mxu0
  %v583 = vadd.f32 %v504, %v582
  %v584 = vpop.f32.mrf.mxu0
  %585 = vmatprep.mubr.f32.mxu0 0.0
  %586 = vmatmul.mubr.f32.gmra.mxu0 %v482
  %v587 = vpop.f32.mrf.mxu0
  %v588 = vadd.f32 %v504, %v587
  %v589 = vpop.f32.mrf.mxu0
  %590 = vdwg.mxu0
  %v591 = vmax.f32 %v573, 0.0
  %v592 = vmax.f32 %v578, 0.0
  %v593 = vmax.f32 %v583, 0.0
  %v594 = vmax.f32 %v588, 0.0
  %595 = vmatprep.subr.mxu0 0.0
  %596 = vmatpush1.msra.mxu0 0.0
  %597 = vmatprep.subr.mxu0 0.0
  %598 = vmatpush1.msra.mxu0 0.0
  %599 = vmatprep.subr.mxu0 0.0
  %600 = vmatpush1.msra.mxu0 0.0
  %601 = vmatprep.subr.mxu0 0.0
  %602 = vmatpush1.msra.mxu0 0.0
  %603 = vmatprep.subr.mxu0 0.0
  %604 = vmatpush1.msra.mxu0 0.0
  %605 = vmatprep.subr.mxu0 0.0
  %606 = vmatpush1.msra.mxu0 0.0
  %607 = vmatprep.subr.mxu0 0.0
  %608 = vmatpush1.msra.mxu0 0.0
  %609 = vmatprep.subr.mxu0 0.0
  %610 = vmatpush1.msra.mxu0 0.0
  %611 = vmatprep.subr.mxu0 0.0
  %612 = vmatpush1.msra.mxu0 0.0
  %613 = vmatprep.subr.mxu0 0.0
  %614 = vmatpush1.msra.mxu0 0.0
  %615 = vmatprep.subr.mxu0 0.0
  %616 = vmatpush1.msra.mxu0 0.0
  %617 = vmatprep.subr.mxu0 0.0
  %618 = vmatpush1.msra.mxu0 0.0
  %619 = vmatprep.subr.mxu0 0.0
  %620 = vmatpush1.msra.mxu0 %v594
  %621 = vmatprep.subr.mxu0 0.0
  %622 = vmatpush1.msra.mxu0 %v593
  %623 = vmatprep.subr.mxu0 0.0
  %624 = vmatpush1.msra.mxu0 %v592
  %625 = vmatprep.subr.mxu0 0.0
  %626 = vmatpush1.msra.mxu0 %v591
  %627 = vmatprep.subr.mxu0 0.0
  %628 = vmatpush2.msra.mxu0 0.0
  %629 = vmatprep.subr.mxu0 0.0
  %630 = vmatpush2.msra.mxu0 0.0
  %631 = vmatprep.subr.mxu0 0.0
  %632 = vmatpush2.msra.mxu0 0.0
  %633 = vmatprep.subr.mxu0 0.0
  %634 = vmatpush2.msra.mxu0 0.0
  %635 = vmatprep.subr.mxu0 0.0
  %636 = vmatpush2.msra.mxu0 0.0
  %637 = vmatprep.subr.mxu0 0.0
  %638 = vmatpush2.msra.mxu0 0.0
  %639 = vmatprep.subr.mxu0 0.0
  %640 = vmatpush2.msra.mxu0 0.0
  %641 = vmatprep.subr.mxu0 0.0
  %642 = vmatpush2.msra.mxu0 0.0
  %643 = vmatprep.subr.mxu0 0.0
  %644 = vmatpush2.msra.mxu0 0.0
  %645 = vmatprep.subr.mxu0 0.0
  %646 = vmatpush2.msra.mxu0 0.0
  %647 = vmatprep.subr.mxu0 0.0
  %648 = vmatpush2.msra.mxu0 0.0
  %649 = vmatprep.subr.mxu0 0.0
  %650 = vmatpush2.msra.mxu0 0.0
  %651 = vmatprep.subr.mxu0 0.0
  %652 = vmatpush2.msra.mxu0 0.0
  %653 = vmatprep.subr.mxu0 0.0
  %654 = vmatpush2.msra.mxu0 0.0
  %655 = vmatprep.subr.mxu0 0.0
  %656 = vmatpush2.msra.mxu0 0.0
  %657 = vmatprep.subr.mxu0 0.0
  %658 = vmatpush2.msra.mxu0 0.0
  %659 = vmatprep.mubr.f32.mxu0 0.0
  %660 = vmatmul.mubr.f32.gmra.mxu0 %v53
  %v661 = vpop.f32.mrf.mxu0
  %v662 = vadd.f32 0.0, %v661
  %v663 = vpop.f32.mrf.mxu0
  %664 = vmatprep.mubr.f32.mxu0 0.0
  %665 = vmatmul.mubr.f32.gmra.mxu0 %v56
  %v666 = vpop.f32.mrf.mxu0
  %v667 = vadd.f32 0.0, %v666
  %v668 = vpop.f32.mrf.mxu0
  %669 = vmatprep.mubr.f32.mxu0 0.0
  %670 = vmatmul.mubr.f32.gmra.mxu0 %v59
  %v671 = vpop.f32.mrf.mxu0
  %v672 = vadd.f32 0.0, %v671
  %v673 = vpop.f32.mrf.mxu0
  %674 = vmatprep.mubr.f32.mxu0 0.0
  %675 = vmatmul.mubr.f32.gmra.mxu0 %v62
  %v676 = vpop.f32.mrf.mxu0
  %v677 = vadd.f32 0.0, %v676
  %v678 = vpop.f32.mrf.mxu0
  %679 = vmatprep.mubr.f32.mxu0 0.0
  %680 = vmatmul.mubr.f32.gmra.mxu0 %v65
  %v681 = vpop.f32.mrf.mxu0
  %v682 = vadd.f32 0.0, %v681
  %v683 = vpop.f32.mrf.mxu0
  %684 = vmatprep.mubr.f32.mxu0 0.0
  %685 = vmatmul.mubr.f32.gmra.mxu0 %v68
  %v686 = vpop.f32.mrf.mxu0
  %v687 = vadd.f32 0.0, %v686
  %v688 = vpop.f32.mrf.mxu0
  %689 = vmatprep.mubr.f32.mxu0 0.0
  %690 = vmatmul.mubr.f32.gmra.mxu0 %v71
  %v691 = vpop.f32.mrf.mxu0
  %v692 = vadd.f32 0.0, %v691
  %v693 = vpop.f32.mrf.mxu0
  %694 = vmatprep.mubr.f32.mxu0 0.0
  %695 = vmatmul.mubr.f32.gmra.mxu0 %v74
  %v696 = vpop.f32.mrf.mxu0
  %v697 = vadd.f32 0.0, %v696
  %v698 = vpop.f32.mrf.mxu0
  %699 = vmatprep.mubr.f32.mxu0 0.0
  %700 = vmatmul.mubr.f32.gmra.mxu0 %v77
  %v701 = vpop.f32.mrf.mxu0
  %v702 = vadd.f32 0.0, %v701
  %v703 = vpop.f32.mrf.mxu0
  %704 = vmatprep.mubr.f32.mxu0 0.0
  %705 = vmatmul.mubr.f32.gmra.mxu0 %v80
  %v706 = vpop.f32.mrf.mxu0
  %v707 = vadd.f32 0.0, %v706
  %v708 = vpop.f32.mrf.mxu0
  %709 = vmatprep.mubr.f32.mxu0 0.0
  %710 = vmatmul.mubr.f32.gmra.mxu0 %v83
  %v711 = vpop.f32.mrf.mxu0
  %v712 = vadd.f32 0.0, %v711
  %v713 = vpop.f32.mrf.mxu0
  %714 = vmatprep.mubr.f32.mxu0 0.0
  %715 = vmatmul.mubr.f32.gmra.mxu0 %v86
  %v716 = vpop.f32.mrf.mxu0
  %v717 = vadd.f32 0.0, %v716
  %v718 = vpop.f32.mrf.mxu0
  %719 = vdwg.mxu0
  %v720 = vadd.f32 %v591, %v662
  %v721 = vadd.f32 %v592, %v667
  %v722 = vadd.f32 %v593, %v672
  %v723 = vadd.f32 %v594, %v677
  %724 = vst.msk [vmem:[#allocation2] sm:$0xff] %vm51, %v720
  %725 = vst.msk [vmem:[#allocation2 + $0x8] sm:$0xff] %vm51, %v721
  %726 = vst.msk [vmem:[#allocation2 + $0x10] sm:$0xff] %vm51, %v722
  %727 = vst.msk [vmem:[#allocation2 + $0x18] sm:$0xff] %vm51, %v723
  %v728 = vadd.f32 %v591, %v682
  %v729 = vadd.f32 %v592, %v687
  %v730 = vadd.f32 %v593, %v692
  %v731 = vadd.f32 %v594, %v697
  %736 = vrot.lane.b32.xlu0 %v728, 32
  %v737 = vpop.permute.xlu0 %736
  %738 = vrot.lane.b32.xlu0 %v729, 32
  %v739 = vpop.permute.xlu0 %738
  %740 = vrot.lane.b32.xlu0 %v730, 32
  %v741 = vpop.permute.xlu0 %740
  %742 = vrot.lane.b32.xlu0 %v731, 32
  %v743 = vpop.permute.xlu0 %742
  %vm748 = vcmask 523520
  %749 = vst.msk [vmem:[#allocation2] sm:$0xff] %vm748, %v737
  %750 = vst.msk [vmem:[#allocation2 + $0x8] sm:$0xff] %vm748, %v739
  %751 = vst.msk [vmem:[#allocation2 + $0x10] sm:$0xff] %vm748, %v741
  %752 = vst.msk [vmem:[#allocation2 + $0x18] sm:$0xff] %vm748, %v743
  %v753 = vadd.f32 %v591, %v702
  %v754 = vadd.f32 %v592, %v707
  %v755 = vadd.f32 %v593, %v712
  %v756 = vadd.f32 %v594, %v717
  %761 = vrot.lane.b32.xlu0 %v753, 64
  %v762 = vpop.permute.xlu0 %761
  %763 = vrot.lane.b32.xlu0 %v754, 64
  %v764 = vpop.permute.xlu0 %763
  %765 = vrot.lane.b32.xlu0 %v755, 64
  %v766 = vpop.permute.xlu0 %765
  %767 = vrot.lane.b32.xlu0 %v756, 64
  %v768 = vpop.permute.xlu0 %767
  %vm773 = vcmask 785920
  %774 = vst.msk [vmem:[#allocation2] sm:$0xff] %vm773, %v762
  %775 = vst.msk [vmem:[#allocation2 + $0x8] sm:$0xff] %vm773, %v764
  %776 = vst.msk [vmem:[#allocation2 + $0x10] sm:$0xff] %vm773, %v766
  %777 = vst.msk [vmem:[#allocation2 + $0x18] sm:$0xff] %vm773, %v768
  %782 = vrot.lane.b32.xlu0 %v591, 96
  %v783 = vpop.permute.xlu0 %782
  %784 = vrot.lane.b32.xlu0 %v592, 96
  %v785 = vpop.permute.xlu0 %784
  %786 = vrot.lane.b32.xlu0 %v593, 96
  %v787 = vpop.permute.xlu0 %786
  %788 = vrot.lane.b32.xlu0 %v594, 96
  %v789 = vpop.permute.xlu0 %788
  %vm794 = vcmask 1048320
  %795 = vst.msk [vmem:[#allocation2] sm:$0xff] %vm794, %v783
  %796 = vst.msk [vmem:[#allocation2 + $0x8] sm:$0xff] %vm794, %v785
  %797 = vst.msk [vmem:[#allocation2 + $0x10] sm:$0xff] %vm794, %v787
  %798 = vst.msk [vmem:[#allocation2 + $0x18] sm:$0xff] %vm794, %v789
  %v799 = vld [vmem:[#allocation2] sm:$0xff]
  %v800 = vld [vmem:[#allocation2 + $0x8] sm:$0xff]
  %v801 = vld [vmem:[#allocation2 + $0x10] sm:$0xff]
  %v802 = vld [vmem:[#allocation2 + $0x18] sm:$0xff]
  %v803 = vld [vmem:[%s6] sm:$0xff]
  %v804 = vld [vmem:[%s6 + $0x8] sm:$0xff]
  %v805 = vld [vmem:[%s6 + $0x10] sm:$0xff]
  %v806 = vld [vmem:[%s6 + $0x18] sm:$0xff]
  %v807 = vld [vmem:[%s6 + $0x20] sm:$0xff]
  %v808 = vld [vmem:[%s6 + $0x28] sm:$0xff]
  %v809 = vld [vmem:[%s6 + $0x30] sm:$0xff]
  %v810 = vld [vmem:[%s6 + $0x38] sm:$0xff]
  %v811 = vld [vmem:[%s6 + $0x40] sm:$0xff]
  %v812 = vld [vmem:[%s6 + $0x48] sm:$0xff]
  %v813 = vld [vmem:[%s6 + $0x50] sm:$0xff]
  %v814 = vld [vmem:[%s6 + $0x58] sm:$0xff]
  %v815 = vld [vmem:[%s6 + $0x60] sm:$0xff]
  %v816 = vld [vmem:[%s6 + $0x68] sm:$0xff]
  %v817 = vld [vmem:[%s6 + $0x70] sm:$0xff]
  %v818 = vld [vmem:[%s6 + $0x78] sm:$0xff]
  %819 = vmatprep.subr.mxu0 0.0
  %820 = vmatpush1.msra.mxu0 %v818
  %821 = vmatprep.subr.mxu0 0.0
  %822 = vmatpush1.msra.mxu0 %v817
  %823 = vmatprep.subr.mxu0 0.0
  %824 = vmatpush1.msra.mxu0 %v816
  %825 = vmatprep.subr.mxu0 0.0
  %826 = vmatpush1.msra.mxu0 %v815
  %827 = vmatprep.subr.mxu0 0.0
  %828 = vmatpush1.msra.mxu0 %v814
  %829 = vmatprep.subr.mxu0 0.0
  %830 = vmatpush1.msra.mxu0 %v813
  %831 = vmatprep.subr.mxu0 0.0
  %832 = vmatpush1.msra.mxu0 %v812
  %833 = vmatprep.subr.mxu0 0.0
  %834 = vmatpush1.msra.mxu0 %v811
  %835 = vmatprep.subr.mxu0 0.0
  %836 = vmatpush1.msra.mxu0 %v810
  %837 = vmatprep.subr.mxu0 0.0
  %838 = vmatpush1.msra.mxu0 %v809
  %839 = vmatprep.subr.mxu0 0.0
  %840 = vmatpush1.msra.mxu0 %v808
  %841 = vmatprep.subr.mxu0 0.0
  %842 = vmatpush1.msra.mxu0 %v807
  %843 = vmatprep.subr.mxu0 0.0
  %844 = vmatpush1.msra.mxu0 %v806
  %845 = vmatprep.subr.mxu0 0.0
  %846 = vmatpush1.msra.mxu0 %v805
  %847 = vmatprep.subr.mxu0 0.0
  %848 = vmatpush1.msra.mxu0 %v804
  %849 = vmatprep.subr.mxu0 0.0
  %850 = vmatpush1.msra.mxu0 %v803
  %851 = vmatprep.subr.mxu0 0.0
  %852 = vmatpush2.msra.mxu0 0.0
  %853 = vmatprep.subr.mxu0 0.0
  %854 = vmatpush2.msra.mxu0 0.0
  %855 = vmatprep.subr.mxu0 0.0
  %856 = vmatpush2.msra.mxu0 0.0
  %857 = vmatprep.subr.mxu0 0.0
  %858 = vmatpush2.msra.mxu0 0.0
  %859 = vmatprep.subr.mxu0 0.0
  %860 = vmatpush2.msra.mxu0 0.0
  %861 = vmatprep.subr.mxu0 0.0
  %862 = vmatpush2.msra.mxu0 0.0
  %863 = vmatprep.subr.mxu0 0.0
  %864 = vmatpush2.msra.mxu0 0.0
  %865 = vmatprep.subr.mxu0 0.0
  %866 = vmatpush2.msra.mxu0 0.0
  %867 = vmatprep.subr.mxu0 0.0
  %868 = vmatpush2.msra.mxu0 0.0
  %869 = vmatprep.subr.mxu0 0.0
  %870 = vmatpush2.msra.mxu0 0.0
  %871 = vmatprep.subr.mxu0 0.0
  %872 = vmatpush2.msra.mxu0 0.0
  %873 = vmatprep.subr.mxu0 0.0
  %874 = vmatpush2.msra.mxu0 0.0
  %875 = vmatprep.subr.mxu0 0.0
  %876 = vmatpush2.msra.mxu0 0.0
  %877 = vmatprep.subr.mxu0 0.0
  %878 = vmatpush2.msra.mxu0 0.0
  %879 = vmatprep.subr.mxu0 0.0
  %880 = vmatpush2.msra.mxu0 0.0
  %881 = vmatprep.subr.mxu0 0.0
  %882 = vmatpush2.msra.mxu0 0.0
  %883 = vmatprep.mubr.f32.mxu0 0.0
  %884 = vmatmul.mubr.f32.gmra.mxu0 %v799
  %v885 = vpop.f32.mrf.mxu0
  %v886 = vadd.f32 0.0, %v885
  %v887 = vpop.f32.mrf.mxu0
  %888 = vmatprep.mubr.f32.mxu0 0.0
  %889 = vmatmul.mubr.f32.gmra.mxu0 %v800
  %v890 = vpop.f32.mrf.mxu0
  %v891 = vadd.f32 0.0, %v890
  %v892 = vpop.f32.mrf.mxu0
  %893 = vmatprep.mubr.f32.mxu0 0.0
  %894 = vmatmul.mubr.f32.gmra.mxu0 %v801
  %v895 = vpop.f32.mrf.mxu0
  %v896 = vadd.f32 0.0, %v895
  %v897 = vpop.f32.mrf.mxu0
  %898 = vmatprep.mubr.f32.mxu0 0.0
  %899 = vmatmul.mubr.f32.gmra.mxu0 %v802
  %v900 = vpop.f32.mrf.mxu0
  %v901 = vadd.f32 0.0, %v900
  %v902 = vpop.f32.mrf.mxu0
  %903 = vdwg.mxu0
  %904 = vst.msk [vmem:[#allocation3] sm:$0xff] %vm51, %v886
  %905 = vst.msk [vmem:[#allocation3 + $0x8] sm:$0xff] %vm51, %v891
  %906 = vst.msk [vmem:[#allocation3 + $0x10] sm:$0xff] %vm51, %v896
  %907 = vst.msk [vmem:[#allocation3 + $0x18] sm:$0xff] %vm51, %v901
  %v908 = vld [vmem:[#allocation3] sm:$0xff]
  %v909 = vld [vmem:[#allocation3 + $0x8] sm:$0xff]
  %v910 = vld [vmem:[#allocation3 + $0x10] sm:$0xff]
  %v911 = vld [vmem:[#allocation3 + $0x18] sm:$0xff]
  %vm912 = vcmask 195584
  %v913 = vsel %vm912, %v908, 0.0
  %v914 = vsel %vm912, %v909, 0.0
  %v915 = vadd.f32 %v913, %v914
  %v916 = vsel %vm912, %v910, 0.0
  %v917 = vadd.f32 %v915, %v916
  %v918 = vsel %vm912, %v911, 0.0
  %v919 = vadd.f32 %v917, %v918
  %v920 = vrot.slane %v919, 4
  %v921 = vadd.f32 %v919, %v920
  %v922 = vrot.slane %v921, 2
  %v923 = vadd.f32 %v921, %v922
  %v924 = vrot.slane %v923, 1
  %v925 = vadd.f32 %v923, %v924
  %v926 = vmul.f32 %v925, %v425
  %v927 = vmul.f32 %v908, %v908
  %v928 = vmul.f32 %v909, %v909
  %v929 = vmul.f32 %v910, %v910
  %v930 = vmul.f32 %v911, %v911
  %v931 = vsel %vm912, %v927, 0.0
  %v932 = vsel %vm912, %v928, 0.0
  %v933 = vadd.f32 %v931, %v932
  %v934 = vsel %vm912, %v929, 0.0
  %v935 = vadd.f32 %v933, %v934
  %v936 = vsel %vm912, %v930, 0.0
  %v937 = vadd.f32 %v935, %v936
  %v938 = vrot.slane %v937, 4
  %v939 = vadd.f32 %v937, %v938
  %v940 = vrot.slane %v939, 2
  %v941 = vadd.f32 %v939, %v940
  %v942 = vrot.slane %v941, 1
  %v943 = vadd.f32 %v941, %v942
  %v944 = vmul.f32 %v943, %v425
  %v945 = vmul.f32 %v926, %v926
  %v946 = vsub.f32 %v944, %v945
  %v947 = vmax.f32 %v946, 0.0
  %v948 = vld [vmem:[%s8] sm:$0x1]
  %v949 = vadd.f32 %v947, 1e-05
  %v950 = vrsqrt.pop %v949
  %v951 = vmul.f32 %v948, %v950
  %v952 = vld [vmem:[%s8 + $0x1] sm:$0x1]
  %v953 = vmul.f32 %v926, %v951
  %v954 = vsub.f32 %v952, %v953
  %v955 = vlaneseq
  %v956 = vshrl.u32 %v955, 7
  %v957 = vsub.s32 0, %v956
  %v958 = vrot.slane %v951, %v957
  %v959 = vmul.f32 %v908, %v958
  %v960 = vmul.f32 %v909, %v958
  %v961 = vmul.f32 %v910, %v958
  %v962 = vmul.f32 %v911, %v958
  %v963 = vlaneseq
  %v964 = vshrl.u32 %v963, 7
  %v965 = vsub.s32 0, %v964
  %v966 = vrot.slane %v954, %v965
  %v967 = vadd.f32 %v959, %v966
  %v968 = vadd.f32 %v960, %v966
  %v969 = vadd.f32 %v961, %v966
  %v970 = vadd.f32 %v962, %v966
  %v971 = vmax.f32 %v967, 0.0
  %v972 = vmax.f32 %v968, 0.0
  %v973 = vmax.f32 %v969, 0.0
  %v974 = vmax.f32 %v970, 0.0
  %975 = vst.msk [vmem:[#allocation3] sm:$0xff] %vm912, %v971
  %976 = vst.msk [vmem:[#allocation3 + $0x8] sm:$0xff] %vm912, %v972
  %977 = vst.msk [vmem:[#allocation3 + $0x10] sm:$0xff] %vm912, %v973
  %978 = vst.msk [vmem:[#allocation3 + $0x18] sm:$0xff] %vm912, %v974
  %v979 = vld [vmem:[#allocation3] sm:$0xff]
  %v980 = vld [vmem:[#allocation3 + $0x8] sm:$0xff]
  %v981 = vld [vmem:[#allocation3 + $0x10] sm:$0xff]
  %v982 = vld [vmem:[#allocation3 + $0x18] sm:$0xff]
  %v983 = vld [vmem:[%s7] sm:$0xff]
  %v984 = vld [vmem:[%s7 + $0x8] sm:$0xff]
  %v985 = vld [vmem:[%s7 + $0x10] sm:$0xff]
  %v986 = vld [vmem:[%s7 + $0x18] sm:$0xff]
  %v987 = vld [vmem:[%s9] sm:$0x1]
  %v989 = vlaneseq
  %v990 = vshrl.u32 %v989, 7
  %v991 = vsub.s32 0, %v990
  %v992 = vrot.slane %v987, %v991
  %v995 = vsel %vm51, %v979, 0
  %v998 = vsel %vm51, %v980, 0
  %v1001 = vsel %vm51, %v981, 0
  %v1004 = vsel %vm51, %v982, 0
  %1006 = vmatprep.subr.mxu0 0.0
  %1007 = vmatpush1.msra.mxu0 0.0
  %1008 = vmatprep.subr.mxu0 0.0
  %1009 = vmatpush1.msra.mxu0 0.0
  %1010 = vmatprep.subr.mxu0 0.0
  %1011 = vmatpush1.msra.mxu0 0.0
  %1012 = vmatprep.subr.mxu0 0.0
  %1013 = vmatpush1.msra.mxu0 0.0
  %1014 = vmatprep.subr.mxu0 0.0
  %1015 = vmatpush1.msra.mxu0 0.0
  %1016 = vmatprep.subr.mxu0 0.0
  %1017 = vmatpush1.msra.mxu0 0.0
  %1018 = vmatprep.subr.mxu0 0.0
  %1019 = vmatpush1.msra.mxu0 0.0
  %1020 = vmatprep.subr.mxu0 0.0
  %1021 = vmatpush1.msra.mxu0 0.0
  %1022 = vmatprep.subr.mxu0 0.0
  %1023 = vmatpush1.msra.mxu0 0.0
  %1024 = vmatprep.subr.mxu0 0.0
  %1025 = vmatpush1.msra.mxu0 0.0
  %1026 = vmatprep.subr.mxu0 0.0
  %1027 = vmatpush1.msra.mxu0 0.0
  %1028 = vmatprep.subr.mxu0 0.0
  %1029 = vmatpush1.msra.mxu0 0.0
  %1030 = vmatprep.subr.mxu0 0.0
  %1031 = vmatpush1.msra.mxu0 %v986
  %1032 = vmatprep.subr.mxu0 0.0
  %1033 = vmatpush1.msra.mxu0 %v985
  %1034 = vmatprep.subr.mxu0 0.0
  %1035 = vmatpush1.msra.mxu0 %v984
  %1036 = vmatprep.subr.mxu0 0.0
  %1037 = vmatpush1.msra.mxu0 %v983
  %1038 = vmatprep.subr.mxu0 0.0
  %1039 = vmatpush2.msra.mxu0 0.0
  %1040 = vmatprep.subr.mxu0 0.0
  %1041 = vmatpush2.msra.mxu0 0.0
  %1042 = vmatprep.subr.mxu0 0.0
  %1043 = vmatpush2.msra.mxu0 0.0
  %1044 = vmatprep.subr.mxu0 0.0
  %1045 = vmatpush2.msra.mxu0 0.0
  %1046 = vmatprep.subr.mxu0 0.0
  %1047 = vmatpush2.msra.mxu0 0.0
  %1048 = vmatprep.subr.mxu0 0.0
  %1049 = vmatpush2.msra.mxu0 0.0
  %1050 = vmatprep.subr.mxu0 0.0
  %1051 = vmatpush2.msra.mxu0 0.0
  %1052 = vmatprep.subr.mxu0 0.0
  %1053 = vmatpush2.msra.mxu0 0.0
  %1054 = vmatprep.subr.mxu0 0.0
  %1055 = vmatpush2.msra.mxu0 0.0
  %1056 = vmatprep.subr.mxu0 0.0
  %1057 = vmatpush2.msra.mxu0 0.0
  %1058 = vmatprep.subr.mxu0 0.0
  %1059 = vmatpush2.msra.mxu0 0.0
  %1060 = vmatprep.subr.mxu0 0.0
  %1061 = vmatpush2.msra.mxu0 0.0
  %1062 = vmatprep.subr.mxu0 0.0
  %1063 = vmatpush2.msra.mxu0 0.0
  %1064 = vmatprep.subr.mxu0 0.0
  %1065 = vmatpush2.msra.mxu0 0.0
  %1066 = vmatprep.subr.mxu0 0.0
  %1067 = vmatpush2.msra.mxu0 0.0
  %1068 = vmatprep.subr.mxu0 0.0
  %1069 = vmatpush2.msra.mxu0 0.0
  %1070 = vmatprep.mubr.f32.mxu0 0.0
  %1071 = vmatmul.mubr.f32.gmra.mxu0 %v995
  %v1072 = vpop.f32.mrf.mxu0
  %v1073 = vadd.f32 %v992, %v1072
  %v1074 = vpop.f32.mrf.mxu0
  %1075 = vmatprep.mubr.f32.mxu0 0.0
  %1076 = vmatmul.mubr.f32.gmra.mxu0 %v998
  %v1077 = vpop.f32.mrf.mxu0
  %v1078 = vadd.f32 %v992, %v1077
  %v1079 = vpop.f32.mrf.mxu0
  %1080 = vmatprep.mubr.f32.mxu0 0.0
  %1081 = vmatmul.mubr.f32.gmra.mxu0 %v1001
  %v1082 = vpop.f32.mrf.mxu0
  %v1083 = vadd.f32 %v992, %v1082
  %v1084 = vpop.f32.mrf.mxu0
  %1085 = vmatprep.mubr.f32.mxu0 0.0
  %1086 = vmatmul.mubr.f32.gmra.mxu0 %v1004
  %v1087 = vpop.f32.mrf.mxu0
  %v1088 = vadd.f32 %v992, %v1087
  %v1089 = vpop.f32.mrf.mxu0
  %1090 = vdwg.mxu0
  %1091 = vst [vmem:[%s10] sm:$0xff] %v1073
  %1092 = vst [vmem:[%s10 + $0x8] sm:$0xff] %v1078
  %1093 = vst [vmem:[%s10 + $0x10] sm:$0xff] %v1083
  %1094 = vst [vmem:[%s10 + $0x18] sm:$0xff] %v1088
  // Predicated region
  $region42: #{forward.1} parent=0 // pred_check
    _
  $region43: #{forward.1} parent=0 // pred_check_branch
    %1096 = sbr.rel (0) target = $region45
  $region44: #{forward.1} parent=0 // pred_region
    _
  $region45: #{forward.1} parent=0 // pred_fallthru
    _
  // Predicated region
  $region46: #{forward.1} parent=0 // pred_check
    _
  $region47: #{forward.1} parent=0 // pred_check_branch
    %1098 = sbr.rel (0) target = $region49
  $region48: #{forward.1} parent=0 // pred_region
    _
  $region49: #{forward.1} parent=0 // pred_fallthru
    _

</llo_original>
